<compile_context>
chip_gen: v7x
topology: tpu7x:2x2x1
jax: 0.10.0
libtpu: 0.0.40
codegen_flags: <defaults>
</compile_context>

<pallas_src>
import functools
import math

import jax
import jax.numpy as jnp
from jax.experimental import pallas as pl
from jax.experimental.pallas import tpu as pltpu


# --------------------------------------------------------------------------- kernels


def _gather_kernel(ids_ref, table_ref, pe_ref, out_ref, buf_ref, sem_ref, *,
                   batch, seq_tile, scale, n_inflight):
    """DMA row-gather path (production / large vocab).

    ids_ref  : SMEM (rows_pad,) int32       -- scalar-prefetched token ids (flattened rows)
    table_ref: HBM  (n_vocab, d_model)      -- memory_space=pl.ANY, rows gathered on demand
    pe_ref   : VMEM (seq_tile, d_model)     -- positional rows for this tile
    out_ref  : VMEM (row_tile, d_model)     -- row_tile = seq_tile * batch flattened rows
    buf_ref  : VMEM (row_tile, d_model)     -- gather landing buffer
    sem_ref  : DMA semaphores, (n_inflight,)
    """
    row_tile, d_model = out_ref.shape
    base = pl.program_id(0) * row_tile

    def start_row(r):
        tok = ids_ref[base + r]
        pltpu.make_async_copy(table_ref.at[pl.ds(tok, 1), :],
                              buf_ref.at[pl.ds(r, 1), :],
                              sem_ref.at[r % n_inflight]).start()

    def wait_row(r):
        # Same-shaped descriptor (src index irrelevant for the wait) on the same semaphore.
        pltpu.make_async_copy(table_ref.at[pl.ds(0, 1), :],
                              buf_ref.at[pl.ds(r, 1), :],
                              sem_ref.at[r % n_inflight]).wait()

    # Prime the in-flight window, then keep ~n_inflight row copies outstanding.
    for r in range(n_inflight):
        start_row(r)

    @pl.loop(0, row_tile)
    def _(r):
        wait_row(r)

        @pl.when(r + n_inflight < row_tile)
        def _():
            start_row(r + n_inflight)

    emb = buf_ref[...].astype(jnp.float32)                          # (row_tile, d_model)
    # Structural broadcast of pe across batch (sublane broadcast + reshape, no matmul).
    pe_rows = jnp.broadcast_to(pe_ref[...][:, None, :],
                               (seq_tile, batch, d_model)).reshape(row_tile, d_model)
    out_ref[...] = (emb * scale + pe_rows).astype(out_ref.dtype)


def _onehot_kernel(ids_ref, table_ref, pe_ref, out_ref, *, batch, seq_tile, n_vocab, scale):
    """Small-vocab fast path: one-hot MXU gather against a VMEM-resident table.

    ids_ref  : VMEM (row_tile, 1) int32
    table_ref: VMEM (n_vocab, d_model)      -- constant block (single-buffered if supported)
    pe_ref   : VMEM (seq_tile, d_model)
    out_ref  : VMEM (row_tile, d_model)
    """
    row_tile, d_model = out_ref.shape
    ids = ids_ref[...]                                              # (row_tile, 1) int32
    tok_iota = jax.lax.broadcasted_iota(jnp.int32, (row_tile, n_vocab), 1)
    # Table is consumed in its native dtype (no full-table astype copy per step); the exact
    # 0/1 one-hot plus HIGHEST precision keeps the f32 gather bit-exact.
    onehot = jnp.where(tok_iota == ids, 1.0, 0.0).astype(table_ref.dtype)
    dot_kwargs = {}
    if table_ref.dtype == jnp.float32:
        dot_kwargs["precision"] = jax.lax.Precision.HIGHEST
    emb = jnp.dot(onehot, table_ref[...], preferred_element_type=jnp.float32, **dot_kwargs)
    pe_rows = jnp.broadcast_to(pe_ref[...][:, None, :],
                               (seq_tile, batch, d_model)).reshape(row_tile, d_model)
    out_ref[...] = (emb * scale + pe_rows).astype(out_ref.dtype)


# --------------------------------------------------------------------------- helpers


def _vmem_capacity_bytes():
    try:
        return int(pltpu.get_tpu_info().vmem_capacity_bytes)
    except Exception:
        return 128 << 20        # conservative default for v5e/v6e; v7x reports 64 MiB


def _vmem_limit_bytes(working_set_bytes, vmem_cap):
    # Never request the whole chip: leave >= 8 MiB headroom for compiler scratch and output
    # double-buffers.  On 128 MiB parts this allows > 64 MiB; on v7x it tops out ~56 MiB.
    ceiling = max(16 << 20, vmem_cap - (8 << 20))
    return int(min(max(int(working_set_bytes), 32 << 20), ceiling))


def _legalize_seq_tile(seq, batch, d_model, out_itemsize, override=None):
    if override is not None:
        seq_tile = max(1, int(override))
    else:
        bytes_per_row = 3 * d_model * max(out_itemsize, 4)   # gather buf + 2x out block
        rows_budget = max(8, min(1024, (6 << 20) // max(bytes_per_row, 1)))
        seq_tile = max(1, rows_budget // max(batch, 1))
        if seq >= 32:
            # keep >= 2 grid steps so the "parallel" axis can shard across v7x's 2 TCs
            seq_tile = min(seq_tile, pl.cdiv(seq, 2))
    if seq_tile >= seq:
        return seq                          # single tile: full-dim blocks are always legal
    seq_tile = pl.cdiv(seq_tile, 8) * 8     # multi-tile: keep blocks 8-row aligned
    return seq if seq_tile >= seq else seq_tile


# --------------------------------------------------------------------------- pallas_call wrappers


def _call_gather(ids_flat, table, pe2d, *, batch, seq_tile, num_tiles, scale, out_dtype,
                 vmem_cap):
    n_vocab, d_model = table.shape
    row_tile = seq_tile * batch
    rows_pad = num_tiles * row_tile
    n_inflight = min(8, row_tile)
    working = (3 * row_tile * d_model * 4        # gather buf + double-buffered out tile
               + 2 * seq_tile * d_model * 4      # double-buffered pe tile
               + (4 << 20))
    kernel = functools.partial(_gather_kernel, batch=batch, seq_tile=seq_tile,
                               scale=scale, n_inflight=n_inflight)
    grid_spec = pltpu.PrefetchScalarGridSpec(
        num_scalar_prefetch=1,                   # ids -> SMEM, available before the grid runs
        grid=(num_tiles,),
        in_specs=[
            pl.BlockSpec(memory_space=pl.ANY),                           # table stays in HBM
            pl.BlockSpec((seq_tile, d_model), lambda t, ids: (t, 0)),    # pe rows per tile
        ],
        out_specs=pl.BlockSpec((row_tile, d_model), lambda t, ids: (t, 0)),
        scratch_shapes=[
            pltpu.VMEM((row_tile, d_model), table.dtype),
            pltpu.SemaphoreType.DMA((n_inflight,)),
        ],
    )
    return pl.pallas_call(
        kernel,
        out_shape=jax.ShapeDtypeStruct((rows_pad, d_model), out_dtype),
        grid_spec=grid_spec,
        compiler_params=pltpu.CompilerParams(
            dimension_semantics=("parallel",),
            vmem_limit_bytes=_vmem_limit_bytes(working, vmem_cap),
        ),
    )(ids_flat, table, pe2d)


def _call_onehot(ids_col, table, pe2d, *, batch, seq_tile, num_tiles, scale, out_dtype,
                 vmem_cap):
    n_vocab, d_model = table.shape
    row_tile = seq_tile * batch
    rows_pad = num_tiles * row_tile
    itemsize = jnp.dtype(out_dtype).itemsize
    table_bytes = n_vocab * d_model * jnp.dtype(table.dtype).itemsize
    kernel = functools.partial(_onehot_kernel, batch=batch, seq_tile=seq_tile,
                               n_vocab=n_vocab, scale=scale)

    def build_and_run(single_buffer_table):
        if single_buffer_table:
            # Constant index_map -> fetched once; single-buffer it to halve residency.
            table_spec = pl.BlockSpec((n_vocab, d_model), lambda t: (0, 0),
                                      pipeline_mode=pl.Buffered(1))
            resident = table_bytes
        else:
            table_spec = pl.BlockSpec((n_vocab, d_model), lambda t: (0, 0))
            resident = 2 * table_bytes
        working = (resident
                   + 2 * seq_tile * d_model * 4
                   + 2 * row_tile * d_model * itemsize
                   + 2 * row_tile * max(n_vocab, 128) * 4    # one-hot / iota intermediates
                   + (4 << 20))
        return pl.pallas_call(
            kernel,
            out_shape=jax.ShapeDtypeStruct((rows_pad, d_model), out_dtype),
            grid=(num_tiles,),
            in_specs=[
                pl.BlockSpec((row_tile, 1), lambda t: (t, 0)),       # token ids per tile
                table_spec,                                          # resident table
                pl.BlockSpec((seq_tile, d_model), lambda t: (t, 0)), # pe rows per tile
            ],
            out_specs=pl.BlockSpec((row_tile, d_model), lambda t: (t, 0)),
            compiler_params=pltpu.CompilerParams(
                dimension_semantics=("parallel",),
                vmem_limit_bytes=_vmem_limit_bytes(working, vmem_cap),
            ),
        )(ids_col, table, pe2d)

    try:
        return build_and_run(True)
    except Exception:
        # pipeline_mode=pl.Buffered(1) unavailable in this build: fall back to the default
        # double-buffered constant table block (correctness unaffected).
        return build_and_run(False)


# --------------------------------------------------------------------------- public entry


def learned_positional_embedding(x, table, pe, *, path=None, seq_tile=None):
    """x: (seq, batch) int ids; table: (n_vocab, d_model); pe: (max_len, 1, d_model).

    Returns table[x] * sqrt(d_model) + pe[:seq], shape (seq, batch, d_model).
    Out-of-range ids are clamped to [0, n_vocab-1] (PyTorch's nn.Embedding would raise).
    """
    seq, batch = x.shape
    n_vocab, d_model = table.shape
    max_len = pe.shape[0]
    if seq > max_len:
        raise ValueError(f"seq={seq} exceeds max_len={max_len}")
    scale = math.sqrt(d_model)
    out_dtype = table.dtype
    itemsize = jnp.dtype(out_dtype).itemsize
    vmem_cap = _vmem_capacity_bytes()
    table_bytes = n_vocab * d_model * jnp.dtype(table.dtype).itemsize

    if path is None:
        # One-hot gather costs ~n_vocab/2 flop per output byte; keep it only while that stays
        # below the HBM ridge on every generation (v5e ~240 flop/B) *and* the table is far
        # under the VMEM residency cutoff (v7x has only 64 MiB).  Otherwise DMA row-gather.
        small = n_vocab <= 512 and table_bytes <= min(24 << 20, vmem_cap // 4)
        path = "onehot" if small else "gather"

    seq_tile = _legalize_seq_tile(seq, batch, d_model, itemsize, seq_tile)
    num_tiles = pl.cdiv(seq, seq_tile)
    seq_pad = num_tiles * seq_tile
    rows_pad = seq_pad * batch

    ids = jnp.clip(x.astype(jnp.int32), 0, n_vocab - 1)
    pe2d = pe[:seq, 0, :]
    if seq_pad != seq:
        ids = jnp.pad(ids, ((0, seq_pad - seq), (0, 0)))     # pad ids are valid index 0
        pe2d = jnp.pad(pe2d, ((0, seq_pad - seq), (0, 0)))

    common = dict(batch=batch, seq_tile=seq_tile, num_tiles=num_tiles,
                  scale=scale, out_dtype=out_dtype, vmem_cap=vmem_cap)
    if path == "gather":
        out = _call_gather(ids.reshape(rows_pad), table, pe2d, **common)
    elif path == "onehot":
        out = _call_onehot(ids.reshape(rows_pad, 1), table, pe2d, **common)
    else:
        raise ValueError(f"unknown path: {path}")

    out = out.reshape(seq_pad, batch, d_model)
    return out[:seq] if seq_pad != seq else out


# --------------------------------------------------------------------------- demo / check


if __name__ == "__main__":
    key = jax.random.PRNGKey(0)
    k1, k2, k3, k4 = jax.random.split(key, 4)

    # Config A: small shapes, single tile.
    d_model, n_vocab, max_len = 128, 32, 16
    seq, batch = 8, 4
    table = jax.random.normal(k1, (n_vocab, d_model), dtype=jnp.float32)
    pe = 0.02 * jax.random.normal(k2, (max_len, 1, d_model), dtype=jnp.float32)
    x = jax.random.randint(k3, (seq, batch), 0, n_vocab, dtype=jnp.int32)
    ref = table[x] * math.sqrt(d_model) + pe[:seq]

    for p in ("gather", "onehot", None):            # None -> auto (small vocab => onehot)
        out = jax.block_until_ready(learned_positional_embedding(x, table, pe, path=p))
        assert out.shape == (seq, batch, d_model)
        assert jnp.allclose(out, ref, atol=1e-5, rtol=1e-5), \
            (p, float(jnp.max(jnp.abs(out - ref))))

    # Config B: non-divisible seq with a forced small tile -> exercises padding + 2 grid steps.
    seq_b = 10
    x_b = jax.random.randint(k4, (seq_b, batch), 0, n_vocab, dtype=jnp.int32)
    ref_b = table[x_b] * math.sqrt(d_model) + pe[:seq_b]
    for p in ("gather", "onehot"):
        out_b = jax.block_until_ready(
            learned_positional_embedding(x_b, table, pe, path=p, seq_tile=8))
        assert out_b.shape == (seq_b, batch, d_model)
        assert jnp.allclose(out_b, ref_b, atol=1e-5, rtol=1e-5), \
            (p, float(jnp.max(jnp.abs(out_b - ref_b))))

    print("KERNEL_OK")
</pallas_src>

<mosaic_0001>
module attributes {stable_mosaic.version = 11 : i64} {
  func.func @_gather_kernel(%arg0: i32, %arg1: memref<32xi32, #tpu.memory_space<smem>>, %arg2: memref<32x128xf32, #tpu.memory_space<any>>, %arg3: memref<8x128xf32, #tpu.memory_space<vmem>>, %arg4: memref<32x128xf32, #tpu.memory_space<vmem>>, %arg5: memref<32x128xf32, #tpu.memory_space<vmem>>, %arg6: memref<8x!tpu.dma_semaphore, #tpu.memory_space<semaphore_mem>>) attributes {dimension_semantics = [#tpu.dimension_semantics<parallel>], iteration_bounds = array<i64: 1>, scalar_prefetch = 1 : i64, scratch_operands = 2 : i64, tpu.core_type = #tpu.core_type<tc>, window_params = [{}, {transform_indices = @transform_1, window_bounds = array<i64: 8, 128>}, {transform_indices = @transform_2, window_bounds = array<i64: 32, 128>}]} {
    %c32_i32 = arith.constant 32 : i32
    %0 = arith.muli %arg0, %c32_i32 : i32
    %c0_i32 = arith.constant 0 : i32
    %1 = arith.addi %0, %c0_i32 : i32
    %2 = arith.index_cast %1 : i32 to index
    %3 = memref.load %arg1[%2] : memref<32xi32, #tpu.memory_space<smem>>
    %c0_i32_0 = arith.constant 0 : i32
    %c0_i32_1 = arith.constant 0 : i32
    %4 = tpu.memref_slice %arg2[%3, %c0_i32_1] : memref<32x128xf32, #tpu.memory_space<any>> -> memref<1x128xf32, #tpu.memory_space<any>>
    %c0_i32_2 = arith.constant 0 : i32
    %c0_i32_3 = arith.constant 0 : i32
    %5 = tpu.memref_slice %arg5[%c0_i32_2, %c0_i32_3] : memref<32x128xf32, #tpu.memory_space<vmem>> -> memref<1x128xf32, #tpu.memory_space<vmem>>
    %6 = tpu.memref_slice %arg6[%c0_i32_0] : memref<8x!tpu.dma_semaphore, #tpu.memory_space<semaphore_mem>> -> memref<1x!tpu.dma_semaphore, #tpu.memory_space<semaphore_mem>>
    %7 = tpu.memref_squeeze %6 : memref<1x!tpu.dma_semaphore, #tpu.memory_space<semaphore_mem>> -> memref<!tpu.dma_semaphore, #tpu.memory_space<semaphore_mem>>
    tpu.enqueue_dma source(%4 : memref<1x128xf32, #tpu.memory_space<any>>) target(%5 : memref<1x128xf32, #tpu.memory_space<vmem>>) target_semaphore(%7 : memref<!tpu.dma_semaphore, #tpu.memory_space<semaphore_mem>>)
    %c1_i32 = arith.constant 1 : i32
    %8 = arith.addi %0, %c1_i32 : i32
    %9 = arith.index_cast %8 : i32 to index
    %10 = memref.load %arg1[%9] : memref<32xi32, #tpu.memory_space<smem>>
    %c1_i32_4 = arith.constant 1 : i32
    %c0_i32_5 = arith.constant 0 : i32
    %11 = tpu.memref_slice %arg2[%10, %c0_i32_5] : memref<32x128xf32, #tpu.memory_space<any>> -> memref<1x128xf32, #tpu.memory_space<any>>
    %c1_i32_6 = arith.constant 1 : i32
    %c0_i32_7 = arith.constant 0 : i32
    %12 = tpu.memref_slice %arg5[%c1_i32_6, %c0_i32_7] : memref<32x128xf32, #tpu.memory_space<vmem>> -> memref<1x128xf32, #tpu.memory_space<vmem>>
    %13 = tpu.memref_slice %arg6[%c1_i32_4] : memref<8x!tpu.dma_semaphore, #tpu.memory_space<semaphore_mem>> -> memref<1x!tpu.dma_semaphore, #tpu.memory_space<semaphore_mem>>
    %14 = tpu.memref_squeeze %13 : memref<1x!tpu.dma_semaphore, #tpu.memory_space<semaphore_mem>> -> memref<!tpu.dma_semaphore, #tpu.memory_space<semaphore_mem>>
    tpu.enqueue_dma source(%11 : memref<1x128xf32, #tpu.memory_space<any>>) target(%12 : memref<1x128xf32, #tpu.memory_space<vmem>>) target_semaphore(%14 : memref<!tpu.dma_semaphore, #tpu.memory_space<semaphore_mem>>)
    %c2_i32 = arith.constant 2 : i32
    %15 = arith.addi %0, %c2_i32 : i32
    %16 = arith.index_cast %15 : i32 to index
    %17 = memref.load %arg1[%16] : memref<32xi32, #tpu.memory_space<smem>>
    %c2_i32_8 = arith.constant 2 : i32
    %c0_i32_9 = arith.constant 0 : i32
    %18 = tpu.memref_slice %arg2[%17, %c0_i32_9] : memref<32x128xf32, #tpu.memory_space<any>> -> memref<1x128xf32, #tpu.memory_space<any>>
    %c2_i32_10 = arith.constant 2 : i32
    %c0_i32_11 = arith.constant 0 : i32
    %19 = tpu.memref_slice %arg5[%c2_i32_10, %c0_i32_11] : memref<32x128xf32, #tpu.memory_space<vmem>> -> memref<1x128xf32, #tpu.memory_space<vmem>>
    %20 = tpu.memref_slice %arg6[%c2_i32_8] : memref<8x!tpu.dma_semaphore, #tpu.memory_space<semaphore_mem>> -> memref<1x!tpu.dma_semaphore, #tpu.memory_space<semaphore_mem>>
    %21 = tpu.memref_squeeze %20 : memref<1x!tpu.dma_semaphore, #tpu.memory_space<semaphore_mem>> -> memref<!tpu.dma_semaphore, #tpu.memory_space<semaphore_mem>>
    tpu.enqueue_dma source(%18 : memref<1x128xf32, #tpu.memory_space<any>>) target(%19 : memref<1x128xf32, #tpu.memory_space<vmem>>) target_semaphore(%21 : memref<!tpu.dma_semaphore, #tpu.memory_space<semaphore_mem>>)
    %c3_i32 = arith.constant 3 : i32
    %22 = arith.addi %0, %c3_i32 : i32
    %23 = arith.index_cast %22 : i32 to index
    %24 = memref.load %arg1[%23] : memref<32xi32, #tpu.memory_space<smem>>
    %c3_i32_12 = arith.constant 3 : i32
    %c0_i32_13 = arith.constant 0 : i32
    %25 = tpu.memref_slice %arg2[%24, %c0_i32_13] : memref<32x128xf32, #tpu.memory_space<any>> -> memref<1x128xf32, #tpu.memory_space<any>>
    %c3_i32_14 = arith.constant 3 : i32
    %c0_i32_15 = arith.constant 0 : i32
    %26 = tpu.memref_slice %arg5[%c3_i32_14, %c0_i32_15] : memref<32x128xf32, #tpu.memory_space<vmem>> -> memref<1x128xf32, #tpu.memory_space<vmem>>
    %27 = tpu.memref_slice %arg6[%c3_i32_12] : memref<8x!tpu.dma_semaphore, #tpu.memory_space<semaphore_mem>> -> memref<1x!tpu.dma_semaphore, #tpu.memory_space<semaphore_mem>>
    %28 = tpu.memref_squeeze %27 : memref<1x!tpu.dma_semaphore, #tpu.memory_space<semaphore_mem>> -> memref<!tpu.dma_semaphore, #tpu.memory_space<semaphore_mem>>
    tpu.enqueue_dma source(%25 : memref<1x128xf32, #tpu.memory_space<any>>) target(%26 : memref<1x128xf32, #tpu.memory_space<vmem>>) target_semaphore(%28 : memref<!tpu.dma_semaphore, #tpu.memory_space<semaphore_mem>>)
    %c4_i32 = arith.constant 4 : i32
    %29 = arith.addi %0, %c4_i32 : i32
    %30 = arith.index_cast %29 : i32 to index
    %31 = memref.load %arg1[%30] : memref<32xi32, #tpu.memory_space<smem>>
    %c4_i32_16 = arith.constant 4 : i32
    %c0_i32_17 = arith.constant 0 : i32
    %32 = tpu.memref_slice %arg2[%31, %c0_i32_17] : memref<32x128xf32, #tpu.memory_space<any>> -> memref<1x128xf32, #tpu.memory_space<any>>
    %c4_i32_18 = arith.constant 4 : i32
    %c0_i32_19 = arith.constant 0 : i32
    %33 = tpu.memref_slice %arg5[%c4_i32_18, %c0_i32_19] : memref<32x128xf32, #tpu.memory_space<vmem>> -> memref<1x128xf32, #tpu.memory_space<vmem>>
    %34 = tpu.memref_slice %arg6[%c4_i32_16] : memref<8x!tpu.dma_semaphore, #tpu.memory_space<semaphore_mem>> -> memref<1x!tpu.dma_semaphore, #tpu.memory_space<semaphore_mem>>
    %35 = tpu.memref_squeeze %34 : memref<1x!tpu.dma_semaphore, #tpu.memory_space<semaphore_mem>> -> memref<!tpu.dma_semaphore, #tpu.memory_space<semaphore_mem>>
    tpu.enqueue_dma source(%32 : memref<1x128xf32, #tpu.memory_space<any>>) target(%33 : memref<1x128xf32, #tpu.memory_space<vmem>>) target_semaphore(%35 : memref<!tpu.dma_semaphore, #tpu.memory_space<semaphore_mem>>)
    %c5_i32 = arith.constant 5 : i32
    %36 = arith.addi %0, %c5_i32 : i32
    %37 = arith.index_cast %36 : i32 to index
    %38 = memref.load %arg1[%37] : memref<32xi32, #tpu.memory_space<smem>>
    %c5_i32_20 = arith.constant 5 : i32
    %c0_i32_21 = arith.constant 0 : i32
    %39 = tpu.memref_slice %arg2[%38, %c0_i32_21] : memref<32x128xf32, #tpu.memory_space<any>> -> memref<1x128xf32, #tpu.memory_space<any>>
    %c5_i32_22 = arith.constant 5 : i32
    %c0_i32_23 = arith.constant 0 : i32
    %40 = tpu.memref_slice %arg5[%c5_i32_22, %c0_i32_23] : memref<32x128xf32, #tpu.memory_space<vmem>> -> memref<1x128xf32, #tpu.memory_space<vmem>>
    %41 = tpu.memref_slice %arg6[%c5_i32_20] : memref<8x!tpu.dma_semaphore, #tpu.memory_space<semaphore_mem>> -> memref<1x!tpu.dma_semaphore, #tpu.memory_space<semaphore_mem>>
    %42 = tpu.memref_squeeze %41 : memref<1x!tpu.dma_semaphore, #tpu.memory_space<semaphore_mem>> -> memref<!tpu.dma_semaphore, #tpu.memory_space<semaphore_mem>>
    tpu.enqueue_dma source(%39 : memref<1x128xf32, #tpu.memory_space<any>>) target(%40 : memref<1x128xf32, #tpu.memory_space<vmem>>) target_semaphore(%42 : memref<!tpu.dma_semaphore, #tpu.memory_space<semaphore_mem>>)
    %c6_i32 = arith.constant 6 : i32
    %43 = arith.addi %0, %c6_i32 : i32
    %44 = arith.index_cast %43 : i32 to index
    %45 = memref.load %arg1[%44] : memref<32xi32, #tpu.memory_space<smem>>
    %c6_i32_24 = arith.constant 6 : i32
    %c0_i32_25 = arith.constant 0 : i32
    %46 = tpu.memref_slice %arg2[%45, %c0_i32_25] : memref<32x128xf32, #tpu.memory_space<any>> -> memref<1x128xf32, #tpu.memory_space<any>>
    %c6_i32_26 = arith.constant 6 : i32
    %c0_i32_27 = arith.constant 0 : i32
    %47 = tpu.memref_slice %arg5[%c6_i32_26, %c0_i32_27] : memref<32x128xf32, #tpu.memory_space<vmem>> -> memref<1x128xf32, #tpu.memory_space<vmem>>
    %48 = tpu.memref_slice %arg6[%c6_i32_24] : memref<8x!tpu.dma_semaphore, #tpu.memory_space<semaphore_mem>> -> memref<1x!tpu.dma_semaphore, #tpu.memory_space<semaphore_mem>>
    %49 = tpu.memref_squeeze %48 : memref<1x!tpu.dma_semaphore, #tpu.memory_space<semaphore_mem>> -> memref<!tpu.dma_semaphore, #tpu.memory_space<semaphore_mem>>
    tpu.enqueue_dma source(%46 : memref<1x128xf32, #tpu.memory_space<any>>) target(%47 : memref<1x128xf32, #tpu.memory_space<vmem>>) target_semaphore(%49 : memref<!tpu.dma_semaphore, #tpu.memory_space<semaphore_mem>>)
    %c7_i32 = arith.constant 7 : i32
    %50 = arith.addi %0, %c7_i32 : i32
    %51 = arith.index_cast %50 : i32 to index
    %52 = memref.load %arg1[%51] : memref<32xi32, #tpu.memory_space<smem>>
    %c7_i32_28 = arith.constant 7 : i32
    %c0_i32_29 = arith.constant 0 : i32
    %53 = tpu.memref_slice %arg2[%52, %c0_i32_29] : memref<32x128xf32, #tpu.memory_space<any>> -> memref<1x128xf32, #tpu.memory_space<any>>
    %c7_i32_30 = arith.constant 7 : i32
    %c0_i32_31 = arith.constant 0 : i32
    %54 = tpu.memref_slice %arg5[%c7_i32_30, %c0_i32_31] : memref<32x128xf32, #tpu.memory_space<vmem>> -> memref<1x128xf32, #tpu.memory_space<vmem>>
    %55 = tpu.memref_slice %arg6[%c7_i32_28] : memref<8x!tpu.dma_semaphore, #tpu.memory_space<semaphore_mem>> -> memref<1x!tpu.dma_semaphore, #tpu.memory_space<semaphore_mem>>
    %56 = tpu.memref_squeeze %55 : memref<1x!tpu.dma_semaphore, #tpu.memory_space<semaphore_mem>> -> memref<!tpu.dma_semaphore, #tpu.memory_space<semaphore_mem>>
    tpu.enqueue_dma source(%53 : memref<1x128xf32, #tpu.memory_space<any>>) target(%54 : memref<1x128xf32, #tpu.memory_space<vmem>>) target_semaphore(%56 : memref<!tpu.dma_semaphore, #tpu.memory_space<semaphore_mem>>)
    %c0_i32_32 = arith.constant 0 : i32
    %c32_i32_33 = arith.constant 32 : i32
    %57 = arith.addi %c0_i32_32, %c32_i32_33 : i32
    %c1_i32_34 = arith.constant 1 : i32
    scf.for %arg7 = %c0_i32_32 to %57 step %c1_i32_34  : i32 {
      %c1_i32_41 = arith.constant 1 : i32
      %68 = arith.muli %arg7, %c1_i32_41 : i32
      %c0_i32_42 = arith.constant 0 : i32
      %69 = arith.addi %c0_i32_42, %68 : i32
      %c8_i32 = arith.constant 8 : i32
      %c0_i32_43 = arith.constant 0 : i32
      %70 = arith.cmpi eq, %c8_i32, %c0_i32_43 : i32
      %c1_i32_44 = arith.constant 1 : i32
      %71 = arith.select %70, %c1_i32_44, %c8_i32 : i32
      %72 = arith.remsi %69, %71 : i32
      %c0_i32_45 = arith.constant 0 : i32
      %73 = arith.cmpi ne, %72, %c0_i32_45 : i32
      %c0_i32_46 = arith.constant 0 : i32
      %74 = arith.cmpi slt, %72, %c0_i32_46 : i32
      %c0_i32_47 = arith.constant 0 : i32
      %75 = arith.cmpi slt, %71, %c0_i32_47 : i32
      %76 = arith.xori %74, %75 : i1
      %77 = arith.andi %76, %73 : i1
      %78 = arith.addi %72, %71 : i32
      %79 = arith.select %77, %78, %72 : i32
      %c0_i32_48 = arith.constant 0 : i32
      %c0_i32_49 = arith.constant 0 : i32
      %80 = tpu.memref_slice %arg2[%c0_i32_48, %c0_i32_49] : memref<32x128xf32, #tpu.memory_space<any>> -> memref<1x128xf32, #tpu.memory_space<any>>
      %c0_i32_50 = arith.constant 0 : i32
      %81 = tpu.memref_slice %arg5[%69, %c0_i32_50] : memref<32x128xf32, #tpu.memory_space<vmem>> -> memref<1x128xf32, #tpu.memory_space<vmem>>
      %82 = tpu.memref_slice %arg6[%79] : memref<8x!tpu.dma_semaphore, #tpu.memory_space<semaphore_mem>> -> memref<1x!tpu.dma_semaphore, #tpu.memory_space<semaphore_mem>>
      %83 = tpu.memref_squeeze %82 : memref<1x!tpu.dma_semaphore, #tpu.memory_space<semaphore_mem>> -> memref<!tpu.dma_semaphore, #tpu.memory_space<semaphore_mem>>
      tpu.wait_dma2 semaphore(%83 : memref<!tpu.dma_semaphore, #tpu.memory_space<semaphore_mem>>) src(%80 : memref<1x128xf32, #tpu.memory_space<any>>) dst(%81 : memref<1x128xf32, #tpu.memory_space<vmem>>)
      %c8_i32_51 = arith.constant 8 : i32
      %84 = arith.addi %69, %c8_i32_51 : i32
      %c32_i32_52 = arith.constant 32 : i32
      %85 = arith.cmpi slt, %84, %c32_i32_52 : i32
      %86 = arith.extui %85 : i1 to i32
      %c0_i32_53 = arith.constant 0 : i32
      %87 = arith.cmpi ne, %86, %c0_i32_53 : i32
      scf.if %87 {
        %c8_i32_54 = arith.constant 8 : i32
        %88 = arith.addi %69, %c8_i32_54 : i32
        %89 = arith.addi %0, %88 : i32
        %90 = arith.index_cast %89 : i32 to index
        %91 = memref.load %arg1[%90] : memref<32xi32, #tpu.memory_space<smem>>
        %c8_i32_55 = arith.constant 8 : i32
        %c0_i32_56 = arith.constant 0 : i32
        %92 = arith.cmpi eq, %c8_i32_55, %c0_i32_56 : i32
        %c1_i32_57 = arith.constant 1 : i32
        %93 = arith.select %92, %c1_i32_57, %c8_i32_55 : i32
        %94 = arith.remsi %88, %93 : i32
        %c0_i32_58 = arith.constant 0 : i32
        %95 = arith.cmpi ne, %94, %c0_i32_58 : i32
        %c0_i32_59 = arith.constant 0 : i32
        %96 = arith.cmpi slt, %94, %c0_i32_59 : i32
        %c0_i32_60 = arith.constant 0 : i32
        %97 = arith.cmpi slt, %93, %c0_i32_60 : i32
        %98 = arith.xori %96, %97 : i1
        %99 = arith.andi %98, %95 : i1
        %100 = arith.addi %94, %93 : i32
        %101 = arith.select %99, %100, %94 : i32
        %c0_i32_61 = arith.constant 0 : i32
        %102 = tpu.memref_slice %arg2[%91, %c0_i32_61] : memref<32x128xf32, #tpu.memory_space<any>> -> memref<1x128xf32, #tpu.memory_space<any>>
        %c0_i32_62 = arith.constant 0 : i32
        %103 = tpu.memref_slice %arg5[%88, %c0_i32_62] : memref<32x128xf32, #tpu.memory_space<vmem>> -> memref<1x128xf32, #tpu.memory_space<vmem>>
        %104 = tpu.memref_slice %arg6[%101] : memref<8x!tpu.dma_semaphore, #tpu.memory_space<semaphore_mem>> -> memref<1x!tpu.dma_semaphore, #tpu.memory_space<semaphore_mem>>
        %105 = tpu.memref_squeeze %104 : memref<1x!tpu.dma_semaphore, #tpu.memory_space<semaphore_mem>> -> memref<!tpu.dma_semaphore, #tpu.memory_space<semaphore_mem>>
        tpu.enqueue_dma source(%102 : memref<1x128xf32, #tpu.memory_space<any>>) target(%103 : memref<1x128xf32, #tpu.memory_space<vmem>>) target_semaphore(%105 : memref<!tpu.dma_semaphore, #tpu.memory_space<semaphore_mem>>)
      } else {
      }
    }
    %c32_i32_35 = arith.constant 32 : i32
    %c0 = arith.constant 0 : index
    %c0_36 = arith.constant 0 : index
    %58 = vector.load %arg5[%c0, %c0_36] : memref<32x128xf32, #tpu.memory_space<vmem>>, vector<32x128xf32>
    %c0_37 = arith.constant 0 : index
    %c0_38 = arith.constant 0 : index
    %59 = vector.load %arg3[%c0_37, %c0_38] : memref<8x128xf32, #tpu.memory_space<vmem>>, vector<8x128xf32>
    %60 = vector.shape_cast %59 : vector<8x128xf32> to vector<8x1x128xf32>
    %61 = vector.shape_cast %60 : vector<8x1x128xf32> to vector<8x1x128xf32>
    %62 = vector.broadcast %61 : vector<8x1x128xf32> to vector<8x4x128xf32>
    %63 = vector.shape_cast %62 : vector<8x4x128xf32> to vector<32x128xf32>
    %cst = arith.constant 11.3137083 : f32
    %64 = vector.broadcast %cst : f32 to vector<32x128xf32>
    %65 = arith.mulf %58, %64 : vector<32x128xf32>
    %66 = arith.addf %65, %63 : vector<32x128xf32>
    %c0_39 = arith.constant 0 : index
    %c0_40 = arith.constant 0 : index
    %67 = vector.load %arg4[%c0_39, %c0_40] : memref<32x128xf32, #tpu.memory_space<vmem>>, vector<32x128xf32>
    tpu.vector_store %arg4[%c0_39, %c0_40], %66 {strides = array<i32>} : memref<32x128xf32, #tpu.memory_space<vmem>>, vector<32x128xf32>,
    return
  }
  func.func @transform_1(%arg0: i32, %arg1: memref<32xi32, #tpu.memory_space<smem>>) -> (i32, i32) {
    %c0_i32 = arith.constant 0 : i32
    %c0_i32_0 = arith.constant 0 : i32
    return %arg0, %c0_i32 : i32, i32
  }
  func.func @transform_2(%arg0: i32, %arg1: memref<32xi32, #tpu.memory_space<smem>>) -> (i32, i32) {
    %c0_i32 = arith.constant 0 : i32
    %c0_i32_0 = arith.constant 0 : i32
    return %arg0, %c0_i32 : i32, i32
  }
}

</mosaic_0001>

<llo_original>
// kernel: tpu_custom_call.1
$region0: #{tpu_custom_call.1}
  #allocation0 [shape = 'u32[]', space=smem, size = 0x4, offset = 0x4, fixed_abs, tag = 'smem constant byte address 0x4 - core index']
  #allocation1 [shape = 'u32[144,128]{1,0:T(1,128)}', space=vmem, size = 0x12000, scoped, tag = 'internal scratch']
  #allocation2 [shape = 'f32[32,128]{1,0:T(8,128)}', space=vmem, size = 0x4000, scoped, tag = 'scratch operand']
  #allocation3 [shape = 's32[8]{0}', space=sflag, size = 0x20, scoped, tag = 'scratch operand']
  #allocation4 [shape = 's32[1]{0}', space=sflag, size = 0x4, scoped, tag = 'scoped memory for tpu_custom_call.1']
  #allocation5 [shape = 'u8[512]{0}', space=smem, size = 0x200, scoped, tag = 'prefetched SMEM operand 0']
  #allocation10 [shape = 's32[]', space=sflag, size = 0x4, offset = 0, fixed_abs, tag = 'sflag constant byte address 0x0 - dummy sync flag']
  #allocation11 [shape = 's32[]', space=sflag, size = 0x4, offset = 0, fixed_abs, tag = 'sflag constant byte address 0x0 - dummy sync flag']
  #allocation12 [shape = 'u32[]', space=smem, size = 0x4, offset = 0x44, fixed_abs, tag = 'smem constant byte address 0x44 - assertion arg 0']
  #allocation13 [shape = 'u32[]', space=smem, size = 0x4, offset = 0x48, fixed_abs, tag = 'smem constant byte address 0x48 - assertion arg 1']
  #allocation14 [shape = 's32[]', space=sflag, size = 0x4, offset = 0, fixed_abs, tag = 'sflag constant byte address 0x0 - dummy sync flag']
  #allocation15 [shape = 's32[]', space=sflag, size = 0x4, offset = 0, fixed_abs, tag = 'sflag constant byte address 0x0 - dummy sync flag']
  #allocation16 [shape = 's32[]', space=sflag, size = 0x4, offset = 0, fixed_abs, tag = 'sflag constant byte address 0x0 - dummy sync flag']
  #allocation17 [shape = 's32[]', space=sflag, size = 0x4, offset = 0, fixed_abs, tag = 'sflag constant byte address 0x0 - dummy sync flag']
  #allocation18 [shape = 's32[]', space=sflag, size = 0x4, offset = 0, fixed_abs, tag = 'sflag constant byte address 0x0 - dummy sync flag']
  #allocation19 [shape = 's32[]', space=sflag, size = 0x4, offset = 0, fixed_abs, tag = 'sflag constant byte address 0x0 - dummy sync flag']
  #allocation20 [shape = 's32[]', space=sflag, size = 0x4, offset = 0, fixed_abs, tag = 'sflag constant byte address 0x0 - dummy sync flag']
  #allocation21 [shape = 's32[]', space=sflag, size = 0x4, offset = 0, fixed_abs, tag = 'sflag constant byte address 0x0 - dummy sync flag']
  #allocation22 [shape = 's32[]', space=sflag, size = 0x4, offset = 0, fixed_abs, tag = 'sflag constant byte address 0x0 - dummy sync flag']
  #allocation23 [shape = 's32[]', space=sflag, size = 0x4, offset = 0, fixed_abs, tag = 'sflag constant byte address 0x0 - dummy sync flag']
  #allocation24 [shape = 's32[]', space=sflag, size = 0x4, offset = 0, fixed_abs, tag = 'sflag constant byte address 0x0 - dummy sync flag']
  #allocation25 [shape = 's32[]', space=sflag, size = 0x4, offset = 0, fixed_abs, tag = 'sflag constant byte address 0x0 - dummy sync flag']
  #allocation26 [shape = 's32[]', space=sflag, size = 0x4, offset = 0, fixed_abs, tag = 'sflag constant byte address 0x0 - dummy sync flag']
  #allocation27 [shape = 's32[]', space=sflag, size = 0x4, offset = 0, fixed_abs, tag = 'sflag constant byte address 0x0 - dummy sync flag']
  #allocation28 [shape = 's32[]', space=sflag, size = 0x4, offset = 0, fixed_abs, tag = 'sflag constant byte address 0x0 - dummy sync flag']
  #allocation29 [shape = 's32[]', space=sflag, size = 0x4, offset = 0, fixed_abs, tag = 'sflag constant byte address 0x0 - dummy sync flag']
  %s0 = inlined_call_operand.hbm [shape: s32[32], index: 0, kind: input, shape index: {}]
  %s1 = inlined_call_operand.hbm [shape: f32[32,128], index: 1, kind: input, shape index: {}]
  %s2 = inlined_call_operand.hbm [shape: f32[8,128], index: 2, kind: input, shape index: {}]
  %s3 = inlined_call_operand.hbm [shape: f32[32,128], index: 3, kind: output, shape index: {}]
  %s4 = sld [smem:[#allocation0]]
  $region65: #{tpu_custom_call.1} parent=0
    _
  %s6 = ssub.s32 1, %s4
  %s7 = scalar_select 0, %s6, %s4
  %9 = dma.hbm_to_smem %s0, 16, [#allocation5], [#allocation4]
  %10 = dma.done [#allocation4], 16
  %11 = sfence
  $region1: #{tpu_custom_call.1} parent=0
    #allocation6 [shape = 'u8[4096]{0}', space=vmem, size = 0x1000, scoped, tag = 'input window, operand 2, single buffered']
    #allocation7 [shape = 's32[1]{0}', space=sflag, size = 0x4, scoped, tag = 'scoped memory for tpu_custom_call.1']
    #allocation8 [shape = 's32[1]{0}', space=sflag, size = 0x4, scoped, tag = 'scoped memory for tpu_custom_call.1']
    #allocation9 [shape = 'u8[16384]{0}', space=vmem, size = 0x4000, scoped, tag = 'output window, operand 0, single buffered']
    %12 = vsyncpa [#allocation7], 0
    %13 = vsyncpa [#allocation8], 0
    // Predicated region
    $region2: #{tpu_custom_call.1} parent=1 // pred_check
      _
    $region3: #{tpu_custom_call.1} parent=1 // pred_check_branch
      %15 = sbr.rel (0) target = $region5
    $region4: #{tpu_custom_call.1} parent=1 // pred_region
      %s17 = ssub.s32 128, 128
      %18 = vsyncadd [#allocation7], %s17
      %s20 = sshll.u32 [#allocation6], 4
      %s21 = int_to_ptr.vmem [resolvable:$true] %s20
      %23 = dma.hbm_to_vmem [thread:$0]  %s2, 128, %s21, [#allocation7]
    $region5: #{tpu_custom_call.1} parent=1 // pred_fallthru
      _
    // Predicated region
    $region6: #{tpu_custom_call.1} parent=1 // pred_check
      _
    $region7: #{tpu_custom_call.1} parent=1 // pred_check_branch
      %25 = sbr.rel (0) target = $region9
    $region8: #{tpu_custom_call.1} parent=1 // pred_region
      %26 = dma.done [#allocation7], 128
    $region9: #{tpu_custom_call.1} parent=1 // pred_fallthru
      _
    %s27 = smul.u32 0, 32
    %s28 = sld [smem:[#allocation5 + %s27]]
    %s29 = smul.addr %s28, 16
    %s30 = scalar_lea.hbm %s1, %s29
    // Predicated region
    $region10: #{tpu_custom_call.1} parent=1 // pred_check
      _
    $region11: #{tpu_custom_call.1} parent=1 // pred_check_branch
      %32 = sbr.rel target = $region13
    $region12: #{tpu_custom_call.1} parent=1 // pred_region
      %33 = sst [smem:[#allocation12]] [#allocation11]
      %34 = sst [smem:[#allocation13]] [#allocation10]
    $region13: #{tpu_custom_call.1} parent=1 // pred_fallthru
      _
    %36 = shalt.err (0)
    %s38 = sshll.u32 [#allocation2], 4
    %s39 = int_to_ptr.vmem [resolvable:$true] %s38
    %41 = dma.hbm_to_vmem [thread:$0]  %s30, 16, %s39, [#allocation3]
    %s42 = sadd.s32 %s27, 1
    %s43 = sld [smem:[#allocation5 + %s42]]
    %s44 = smul.addr %s43, 16
    %s45 = scalar_lea.hbm %s1, %s44
    %s46 = scalar_lea.vmem [#allocation2], 1
    %s47 = scalar_lea.sflag [#allocation3], 1
    // Predicated region
    $region14: #{tpu_custom_call.1} parent=1 // pred_check
      _
    $region15: #{tpu_custom_call.1} parent=1 // pred_check_branch
      %49 = sbr.rel target = $region17
    $region16: #{tpu_custom_call.1} parent=1 // pred_region
      %50 = sst [smem:[#allocation12]] [#allocation15]
      %51 = sst [smem:[#allocation13]] [#allocation14]
    $region17: #{tpu_custom_call.1} parent=1 // pred_fallthru
      _
    %53 = shalt.err (0)
    %s55 = sshll.u32 %s46, 4
    %s56 = int_to_ptr.vmem [resolvable:$true] %s55
    %58 = dma.hbm_to_vmem [thread:$0]  %s45, 16, %s56, %s47
    %s59 = sadd.s32 %s27, 2
    %s60 = sld [smem:[#allocation5 + %s59]]
    %s61 = smul.addr %s60, 16
    %s62 = scalar_lea.hbm %s1, %s61
    %s63 = scalar_lea.vmem [#allocation2], 2
    %s64 = scalar_lea.sflag [#allocation3], 2
    // Predicated region
    $region18: #{tpu_custom_call.1} parent=1 // pred_check
      _
    $region19: #{tpu_custom_call.1} parent=1 // pred_check_branch
      %66 = sbr.rel target = $region21
    $region20: #{tpu_custom_call.1} parent=1 // pred_region
      %67 = sst [smem:[#allocation12]] [#allocation17]
      %68 = sst [smem:[#allocation13]] [#allocation16]
    $region21: #{tpu_custom_call.1} parent=1 // pred_fallthru
      _
    %70 = shalt.err (0)
    %s72 = sshll.u32 %s63, 4
    %s73 = int_to_ptr.vmem [resolvable:$true] %s72
    %75 = dma.hbm_to_vmem [thread:$0]  %s62, 16, %s73, %s64
    %s76 = sadd.s32 %s27, 3
    %s77 = sld [smem:[#allocation5 + %s76]]
    %s78 = smul.addr %s77, 16
    %s79 = scalar_lea.hbm %s1, %s78
    %s80 = scalar_lea.vmem [#allocation2], 3
    %s81 = scalar_lea.sflag [#allocation3], 3
    // Predicated region
    $region22: #{tpu_custom_call.1} parent=1 // pred_check
      _
    $region23: #{tpu_custom_call.1} parent=1 // pred_check_branch
      %83 = sbr.rel target = $region25
    $region24: #{tpu_custom_call.1} parent=1 // pred_region
      %84 = sst [smem:[#allocation12]] [#allocation19]
      %85 = sst [smem:[#allocation13]] [#allocation18]
    $region25: #{tpu_custom_call.1} parent=1 // pred_fallthru
      _
    %87 = shalt.err (0)
    %s89 = sshll.u32 %s80, 4
    %s90 = int_to_ptr.vmem [resolvable:$true] %s89
    %92 = dma.hbm_to_vmem [thread:$0]  %s79, 16, %s90, %s81
    %s93 = sadd.s32 %s27, 4
    %s94 = sld [smem:[#allocation5 + %s93]]
    %s95 = smul.addr %s94, 16
    %s96 = scalar_lea.hbm %s1, %s95
    %s97 = scalar_lea.vmem [#allocation2], 4
    %s98 = scalar_lea.sflag [#allocation3], 4
    // Predicated region
    $region26: #{tpu_custom_call.1} parent=1 // pred_check
      _
    $region27: #{tpu_custom_call.1} parent=1 // pred_check_branch
      %100 = sbr.rel target = $region29
    $region28: #{tpu_custom_call.1} parent=1 // pred_region
      %101 = sst [smem:[#allocation12]] [#allocation21]
      %102 = sst [smem:[#allocation13]] [#allocation20]
    $region29: #{tpu_custom_call.1} parent=1 // pred_fallthru
      _
    %104 = shalt.err (0)
    %s106 = sshll.u32 %s97, 4
    %s107 = int_to_ptr.vmem [resolvable:$true] %s106
    %109 = dma.hbm_to_vmem [thread:$0]  %s96, 16, %s107, %s98
    %s110 = sadd.s32 %s27, 5
    %s111 = sld [smem:[#allocation5 + %s110]]
    %s112 = smul.addr %s111, 16
    %s113 = scalar_lea.hbm %s1, %s112
    %s114 = scalar_lea.vmem [#allocation2], 5
    %s115 = scalar_lea.sflag [#allocation3], 5
    // Predicated region
    $region30: #{tpu_custom_call.1} parent=1 // pred_check
      _
    $region31: #{tpu_custom_call.1} parent=1 // pred_check_branch
      %117 = sbr.rel target = $region33
    $region32: #{tpu_custom_call.1} parent=1 // pred_region
      %118 = sst [smem:[#allocation12]] [#allocation23]
      %119 = sst [smem:[#allocation13]] [#allocation22]
    $region33: #{tpu_custom_call.1} parent=1 // pred_fallthru
      _
    %121 = shalt.err (0)
    %s123 = sshll.u32 %s114, 4
    %s124 = int_to_ptr.vmem [resolvable:$true] %s123
    %126 = dma.hbm_to_vmem [thread:$0]  %s113, 16, %s124, %s115
    %s127 = sadd.s32 %s27, 6
    %s128 = sld [smem:[#allocation5 + %s127]]
    %s129 = smul.addr %s128, 16
    %s130 = scalar_lea.hbm %s1, %s129
    %s131 = scalar_lea.vmem [#allocation2], 6
    %s132 = scalar_lea.sflag [#allocation3], 6
    // Predicated region
    $region34: #{tpu_custom_call.1} parent=1 // pred_check
      _
    $region35: #{tpu_custom_call.1} parent=1 // pred_check_branch
      %134 = sbr.rel target = $region37
    $region36: #{tpu_custom_call.1} parent=1 // pred_region
      %135 = sst [smem:[#allocation12]] [#allocation25]
      %136 = sst [smem:[#allocation13]] [#allocation24]
    $region37: #{tpu_custom_call.1} parent=1 // pred_fallthru
      _
    %138 = shalt.err (0)
    %s140 = sshll.u32 %s131, 4
    %s141 = int_to_ptr.vmem [resolvable:$true] %s140
    %143 = dma.hbm_to_vmem [thread:$0]  %s130, 16, %s141, %s132
    %s144 = sadd.s32 %s27, 7
    %s145 = sld [smem:[#allocation5 + %s144]]
    %s146 = smul.addr %s145, 16
    %s147 = scalar_lea.hbm %s1, %s146
    %s148 = scalar_lea.vmem [#allocation2], 7
    %s149 = scalar_lea.sflag [#allocation3], 7
    // Predicated region
    $region38: #{tpu_custom_call.1} parent=1 // pred_check
      _
    $region39: #{tpu_custom_call.1} parent=1 // pred_check_branch
      %151 = sbr.rel target = $region41
    $region40: #{tpu_custom_call.1} parent=1 // pred_region
      %152 = sst [smem:[#allocation12]] [#allocation27]
      %153 = sst [smem:[#allocation13]] [#allocation26]
    $region41: #{tpu_custom_call.1} parent=1 // pred_fallthru
      _
    %155 = shalt.err (0)
    %s157 = sshll.u32 %s148, 4
    %s158 = int_to_ptr.vmem [resolvable:$true] %s157
    %160 = dma.hbm_to_vmem [thread:$0]  %s147, 16, %s158, %s149
    loop: start=0, step=1, limit=32
    $region42: #{tpu_custom_call.1} parent=1 // loop_pre_header
      _
    $region43: #{tpu_custom_call.1} parent=1 // loop_header
      %s162 = sphi 0, %s166
      %p163 = scmp.ge.s32.totalorder %s162, 32
    $region44: #{tpu_custom_call.1} parent=1 // loop_header_branch
      %165 = sbr.rel (%p163) target = $region48
    $region45: #{tpu_custom_call.1} parent=1 // loop_body
      %p167 = scmp.lt.s32.totalorder %s162, 0
      %s168 = ssub.s32 0, %s162
      %s169 = scalar_select %p167, %s168, %s162
      %s170 = sand.u32 %s169, 7
      %s171 = ssub.s32 0, %s170
      %s172 = scalar_select %p167, %s171, %s170
      %p173 = scmp.ne.s32.totalorder %s172, 0
      %p174 = scmp.lt.s32.totalorder %s172, 0
      %p175 = pnand %p174, %p173
      %p176 = pneg %p175
      %s177 = sadd.s32 %s172, 8
      %s178 = scalar_select %p176, %s177, %s172
      %s179 = scalar_lea.sflag [#allocation3], %s178
      %s180 = smul.u32 1, 1
      %s181 = sshll.u32 %s180, 4
      %182 = dma.done %s179, %s181
      %s183 = sadd.s32 %s162, 8
      %p184 = scmp.lt.s32.totalorder %s183, 32
      // Predicated region
      $region49: #{tpu_custom_call.1} parent=45 // pred_check
        %p185 = pneg %p184
      $region50: #{tpu_custom_call.1} parent=45 // pred_check_branch
        %187 = sbr.rel (%p185) target = $region52
      $region51: #{tpu_custom_call.1} parent=45 // pred_region
        %s188 = sadd.s32 %s27, %s183
        %s189 = sld [smem:[#allocation5 + %s188]]
        %p190 = scmp.lt.s32.totalorder %s183, 0
        %s191 = ssub.s32 0, %s183
        %s192 = scalar_select %p190, %s191, %s183
        %s193 = sand.u32 %s192, 7
        %s194 = ssub.s32 0, %s193
        %s195 = scalar_select %p190, %s194, %s193
        %p196 = scmp.ne.s32.totalorder %s195, 0
        %p197 = scmp.lt.s32.totalorder %s195, 0
        %p198 = pnand %p197, %p196
        %p199 = pneg %p198
        %s200 = sadd.s32 %s195, 8
        %s201 = scalar_select %p199, %s200, %s195
        %s202 = smul.addr %s189, 16
        %s203 = scalar_lea.hbm %s1, %s202
        %s204 = scalar_lea.vmem [#allocation2], %s183
        %s205 = scalar_lea.sflag [#allocation3], %s201
        // Predicated region
        $region53: #{tpu_custom_call.1} parent=51 // pred_check
          _
        $region54: #{tpu_custom_call.1} parent=51 // pred_check_branch
          %207 = sbr.rel target = $region56
        $region55: #{tpu_custom_call.1} parent=51 // pred_region
          %208 = sst [smem:[#allocation12]] [#allocation29]
          %209 = sst [smem:[#allocation13]] [#allocation28]
        $region56: #{tpu_custom_call.1} parent=51 // pred_fallthru
          _
        %211 = shalt.err (0)
        %s213 = sshll.u32 %s204, 4
        %s214 = int_to_ptr.vmem [resolvable:$true] %s213
        %216 = dma.hbm_to_vmem [thread:$0]  %s203, 16, %s214, %s205
      $region52: #{tpu_custom_call.1} parent=45 // pred_fallthru
        _
    $region46: #{tpu_custom_call.1} parent=1 // loop_footer
      %s166 = sadd.s32 1, %s162
    $region47: #{tpu_custom_call.1} parent=1 // loop_footer_branch
      %161 = sbr.rel target = $region43
    $region48: #{tpu_custom_call.1} parent=1 // loop_exit
      _
    %v217 = vld [vmem:[#allocation2] sm:$0xff]
    %v218 = vld [vmem:[#allocation2 + $0x8] sm:$0xff]
    %v219 = vld [vmem:[#allocation2 + $0x10] sm:$0xff]
    %v220 = vld [vmem:[#allocation2 + $0x18] sm:$0xff]
    %v221 = vld [vmem:[#allocation6] sm:$0xff]
    %v223 = vcombine.high %v221, %v221
    %v225 = vunpack.c.l.s4 1966171168
    %v226 = vunpack.c.0.s8 %v225
    %v227 = vlaneseq
    %v228 = vshrl.u32 %v227, 7
    %v229 = vsub.s32 %v226, %v228
    %v230 = vrot.slane %v221, %v229
    %v232 = vunpack.c.l.s4 1966171168
    %v233 = vunpack.c.0.s8 %v232
    %v234 = vlaneseq
    %v235 = vshrl.u32 %v234, 7
    %v236 = vsub.s32 %v233, %v235
    %v237 = vrot.slane %v223, %v236
    %v238 = vcombine.high %v230, %v230
    %v239 = vcombine.high %v237, %v237
    %v241 = vunpack.c.l.s4 1966171168
    %v242 = vunpack.c.0.s8 %v241
    %v243 = vlaneseq
    %v244 = vshrl.u32 %v243, 7
    %v245 = vsub.s32 %v242, %v244
    %v246 = vrot.slane %v230, %v245
    %v248 = vunpack.c.l.s4 1966171168
    %v249 = vunpack.c.0.s8 %v248
    %v250 = vlaneseq
    %v251 = vshrl.u32 %v250, 7
    %v252 = vsub.s32 %v249, %v251
    %v253 = vrot.slane %v237, %v252
    %v255 = vunpack.c.l.s4 1966171168
    %v256 = vunpack.c.0.s8 %v255
    %v257 = vlaneseq
    %v258 = vshrl.u32 %v257, 7
    %v259 = vsub.s32 %v256, %v258
    %v260 = vrot.slane %v238, %v259
    %v262 = vunpack.c.l.s4 1966171168
    %v263 = vunpack.c.0.s8 %v262
    %v264 = vlaneseq
    %v265 = vshrl.u32 %v264, 7
    %v266 = vsub.s32 %v263, %v265
    %v267 = vrot.slane %v239, %v266
    %v268 = vcombine.high %v246, %v246
    %v269 = vcombine.high %v253, %v253
    %v270 = vcombine.high %v260, %v260
    %v271 = vcombine.high %v267, %v267
    %v272 = vlaneseq
    %v273 = vshrl.u32 %v272, 7
    %v274 = vsub.s32 0, %v273
    %v275 = vrot.slane %v246, %v274
    %v276 = vlaneseq
    %v277 = vshrl.u32 %v276, 7
    %v278 = vsub.s32 0, %v277
    %v279 = vrot.slane %v260, %v278
    %v280 = vlaneseq
    %v281 = vshrl.u32 %v280, 7
    %v282 = vsub.s32 0, %v281
    %v283 = vrot.slane %v268, %v282
    %v284 = vlaneseq
    %v285 = vshrl.u32 %v284, 7
    %v286 = vsub.s32 0, %v285
    %v287 = vrot.slane %v270, %v286
    %v288 = vlaneseq
    %v289 = vshrl.u32 %v288, 7
    %v290 = vsub.s32 0, %v289
    %v291 = vrot.slane %v253, %v290
    %v292 = vlaneseq
    %v293 = vshrl.u32 %v292, 7
    %v294 = vsub.s32 0, %v293
    %v295 = vrot.slane %v267, %v294
    %v296 = vlaneseq
    %v297 = vshrl.u32 %v296, 7
    %v298 = vsub.s32 0, %v297
    %v299 = vrot.slane %v269, %v298
    %v300 = vlaneseq
    %v301 = vshrl.u32 %v300, 7
    %v302 = vsub.s32 0, %v301
    %v303 = vrot.slane %v271, %v302
    %v304 = vmul.f32 %v217, 11.313708
    %v305 = vmul.f32 %v218, 11.313708
    %v306 = vmul.f32 %v219, 11.313708
    %v307 = vmul.f32 %v220, 11.313708
    %v308 = vcombine.low %v275, %v279
    %v309 = vcombine.low %v283, %v287
    %v310 = vcombine.low %v291, %v295
    %v311 = vcombine.low %v299, %v303
    %v316 = vadd.f32 %v304, %v308
    %v317 = vadd.f32 %v305, %v309
    %v318 = vadd.f32 %v306, %v310
    %v319 = vadd.f32 %v307, %v311
    %320 = vst [vmem:[#allocation9] sm:$0xff] %v316
    %321 = vst [vmem:[#allocation9 + $0x8] sm:$0xff] %v317
    %322 = vst [vmem:[#allocation9 + $0x10] sm:$0xff] %v318
    %323 = vst [vmem:[#allocation9 + $0x18] sm:$0xff] %v319
    // Predicated region
    $region57: #{tpu_custom_call.1} parent=1 // pred_check
      _
    $region58: #{tpu_custom_call.1} parent=1 // pred_check_branch
      %325 = sbr.rel (0) target = $region60
    $region59: #{tpu_custom_call.1} parent=1 // pred_region
      %s327 = ssub.s32 512, 512
      %328 = vsyncadd [#allocation8], %s327
      %s329 = sshll.u32 [#allocation9], 4
      %s330 = int_to_ptr.vmem [resolvable:$true] %s329
      %335 = dma.vmem_to_hbm [thread:$0]  %s330, 512, %s3, [#allocation8], 128, 128, 8
    $region60: #{tpu_custom_call.1} parent=1 // pred_fallthru
      _
    // Predicated region
    $region61: #{tpu_custom_call.1} parent=1 // pred_check
      _
    $region62: #{tpu_custom_call.1} parent=1 // pred_check_branch
      %337 = sbr.rel (0) target = $region64
    $region63: #{tpu_custom_call.1} parent=1 // pred_region
      %338 = dma.done [#allocation8], 512
    $region64: #{tpu_custom_call.1} parent=1 // pred_fallthru
      _
    %339 = vsyncpa [#allocation7], 1
    %340 = vsyncpa [#allocation8], 1
  %341 = vsyncmov [#allocation3]
  %s342 = vpop.sfrf %341
  %p343 = scmp.eq.s32.totalorder %s342, 0
  %p344 = pneg %p343
  %346 = shalt.err (%p344)
  %s347 = scalar_lea.sflag [#allocation3], 1
  %348 = vsyncmov %s347
  %s349 = vpop.sfrf %348
  %p350 = scmp.eq.s32.totalorder %s349, 0
  %p351 = pneg %p350
  %353 = shalt.err (%p351)
  %s354 = scalar_lea.sflag [#allocation3], 2
  %355 = vsyncmov %s354
  %s356 = vpop.sfrf %355
  %p357 = scmp.eq.s32.totalorder %s356, 0
  %p358 = pneg %p357
  %360 = shalt.err (%p358)
  %s361 = scalar_lea.sflag [#allocation3], 3
  %362 = vsyncmov %s361
  %s363 = vpop.sfrf %362
  %p364 = scmp.eq.s32.totalorder %s363, 0
  %p365 = pneg %p364
  %367 = shalt.err (%p365)
  %s368 = scalar_lea.sflag [#allocation3], 4
  %369 = vsyncmov %s368
  %s370 = vpop.sfrf %369
  %p371 = scmp.eq.s32.totalorder %s370, 0
  %p372 = pneg %p371
  %374 = shalt.err (%p372)
  %s375 = scalar_lea.sflag [#allocation3], 5
  %376 = vsyncmov %s375
  %s377 = vpop.sfrf %376
  %p378 = scmp.eq.s32.totalorder %s377, 0
  %p379 = pneg %p378
  %381 = shalt.err (%p379)
  %s382 = scalar_lea.sflag [#allocation3], 6
  %383 = vsyncmov %s382
  %s384 = vpop.sfrf %383
  %p385 = scmp.eq.s32.totalorder %s384, 0
  %p386 = pneg %p385
  %388 = shalt.err (%p386)
  %s389 = scalar_lea.sflag [#allocation3], 7
  %390 = vsyncmov %s389
  %s391 = vpop.sfrf %390
  %p392 = scmp.eq.s32.totalorder %s391, 0
  %p393 = pneg %p392
  %395 = shalt.err (%p393)

</llo_original>
